<compile_context>
chip_gen: v6e
topology: v6e:2x2x1
jax: 0.10.0
libtpu: 0.0.40
codegen_flags: <defaults>
</compile_context>

<pallas_src>
import functools

import jax
import jax.numpy as jnp
from jax import lax
from jax.experimental import pallas as pl
from jax.experimental.pallas import tpu as pltpu


def _round_up(x, m):
    return ((x + m - 1) // m) * m


def pool_aggregator_kernel(nodes_ref, neighs_ref, p_ref, w_ref, out_ref, *,
                           k, in_dim, weighted, activate, not_final_layer,
                           residue, mm_dtype):
    d = in_dim
    nodes_p = nodes_ref[...]                       # (TN, D) f32, zero-padded cols >= d
    nodes = nodes_p[:, :d]                         # (TN, d) f32 (lane slice at offset 0)
    P = p_ref[...]                                 # (d, D) mm_dtype  (resident)
    W = w_ref[...]                                 # (D, D) mm_dtype  (resident)

    # Self row of the merged feature: nodes @ P
    h_self = jnp.dot(nodes.astype(mm_dtype), P,
                     preferred_element_type=jnp.float32)               # (TN, D) f32

    if not weighted:
        # aggre_func = elementwise max over the (k+1) merged rows, folded into an
        # accumulator — k unrolled matmuls, no in-kernel reshape/relayout.
        pooled = h_self
        for j in range(k):
            slab = neighs_ref[:, pl.ds(j * d, d)]                      # (TN, d)
            h = jnp.dot(slab.astype(mm_dtype), P,
                        preferred_element_type=jnp.float32)
            pooled = jnp.maximum(pooled, h)
    else:
        # getWeight: softmax over the (k+1) similarities (neighbors first, self last).
        sims, hs = [], []
        for j in range(k):
            slab = neighs_ref[:, pl.ds(j * d, d)]
            sims.append(jnp.sum(slab.astype(jnp.float32) * nodes,
                                axis=1, keepdims=True))                # (TN, 1)
            hs.append(jnp.dot(slab.astype(mm_dtype), P,
                              preferred_element_type=jnp.float32))
        sim_self = jnp.sum(nodes * nodes, axis=1, keepdims=True)
        m = sim_self
        for s in sims:
            m = jnp.maximum(m, s)
        e_self = jnp.exp(sim_self - m)
        es = [jnp.exp(s - m) for s in sims]
        denom = e_self
        for e in es:
            denom = denom + e
        inv = pl.reciprocal(denom, approx=True)
        pooled = h_self * (e_self * inv)
        for e, h in zip(es, hs):
            pooled = jnp.maximum(pooled, h * (e * inv))

    # new_feature = pooled @ W
    new = jnp.dot(pooled.astype(mm_dtype), W,
                  preferred_element_type=jnp.float32)                  # (TN, D) f32
    if activate and not_final_layer:
        new = jnp.maximum(new, 0.0)

    # F.normalize(p=2, dim=1): x / max(||x||, 1e-12) == x * rsqrt(max(sum(x^2), 1e-24))
    inv_n = lax.rsqrt(jnp.maximum(jnp.sum(new * new, axis=1, keepdims=True), 1e-24))
    new = new * inv_n

    if residue:
        res = nodes_p + new                        # padded columns stay exactly 0
        inv_r = lax.rsqrt(jnp.maximum(jnp.sum(res * res, axis=1, keepdims=True), 1e-24))
        out_ref[...] = res * inv_r
    else:
        out_ref[...] = new


def pool_aggregator(nodes, neighs, P, W, *, weighted=False, activate=False,
                    not_final_layer=True, residue=True, tile_n=512,
                    mm_dtype=jnp.bfloat16, vmem_budget_bytes=36 * 2**20):
    n, d = nodes.shape
    _, k, d2 = neighs.shape
    in_dim, out_dim = P.shape
    assert d == d2 == in_dim, "feature-dim mismatch"
    assert W.shape[0] == out_dim and in_dim == out_dim, (
        "non-concate PoolAggregator path requires in_dim == out_dim "
        "(W multiplies the out_dim-wide pooled features; residue adds nodes + new)")

    # Lane-dense feature width used inside the kernel (zero padding, sliced off below).
    D = _round_up(out_dim, 128)

    # Free layout change: neighbors (n, k, d) -> (n, k*d), row-major contiguous merge.
    neighs_f = neighs.reshape(n, k * d)

    # Pick tile_n against a VMEM budget: double-buffered neighbors + nodes + out,
    # plus the (tiny) resident weight matrices.  Keeps us safe on v7x (64 MiB VMEM)
    # while allowing v5e/v6e-sized tiles.
    itm_n = jnp.dtype(neighs_f.dtype).itemsize
    itm_w = jnp.dtype(mm_dtype).itemsize
    weight_bytes = 2 * (in_dim * D + D * D) * itm_w
    row_bytes = 2 * (k * d * itm_n) + 2 * (D * 4) + 2 * (D * 4)
    cap = max(8, (vmem_budget_bytes - weight_bytes) // row_bytes)
    t = max(8, min(int(tile_n), int(cap), _round_up(n, 8)))
    t = (t // 8) * 8
    n_pad = _round_up(n, t)

    nodes_p = jnp.pad(nodes.astype(jnp.float32), ((0, n_pad - n), (0, D - d)))
    neighs_p = jnp.pad(neighs_f, ((0, n_pad - n), (0, 0)))
    P_p = jnp.pad(P, ((0, 0), (0, D - out_dim))).astype(mm_dtype)            # (d, D)
    W_p = jnp.pad(W, ((0, D - out_dim), (0, D - out_dim))).astype(mm_dtype)  # (D, D)

    kernel = functools.partial(
        pool_aggregator_kernel, k=k, in_dim=in_dim, weighted=weighted,
        activate=activate, not_final_layer=not_final_layer, residue=residue,
        mm_dtype=mm_dtype)

    out = pl.pallas_call(
        kernel,
        out_shape=jax.ShapeDtypeStruct((n_pad, D), jnp.float32),
        grid_spec=pltpu.PrefetchScalarGridSpec(
            num_scalar_prefetch=0,
            grid=(n_pad // t,),
            in_specs=[
                pl.BlockSpec((t, D), lambda i: (i, 0)),         # nodes (padded)
                pl.BlockSpec((t, k * d), lambda i: (i, 0)),     # neighbors, lane-dense
                pl.BlockSpec((in_dim, D), lambda i: (0, 0)),    # P (resident)
                pl.BlockSpec((D, D), lambda i: (0, 0)),         # W (resident)
            ],
            out_specs=pl.BlockSpec((t, D), lambda i: (i, 0)),   # lane-dense stores
        ),
        compiler_params=pltpu.CompilerParams(
            dimension_semantics=("parallel",),
            vmem_limit_bytes=48 * 1024 * 1024),
    )(nodes_p, neighs_p, P_p, W_p)

    return out[:n, :out_dim]


if __name__ == "__main__":
    # Small shapes consistent with the module; residue=True requires in_dim == out_dim.
    n, k, in_dim, out_dim = 128, 4, 32, 32

    key = jax.random.PRNGKey(0)
    k1, k2, k3, k4 = jax.random.split(key, 4)

    nodes = jax.random.normal(k1, (n, in_dim), dtype=jnp.float32)
    neighs = jax.random.normal(k2, (n, k, in_dim), dtype=jnp.float32)

    # Deterministic xavier_uniform_-style init: U(-b, b), b = sqrt(6/(fan_in+fan_out))
    bound = (6.0 / (in_dim + out_dim)) ** 0.5
    W = jax.random.uniform(k3, (in_dim, out_dim), jnp.float32, -bound, bound)
    P = jax.random.uniform(k4, (in_dim, out_dim), jnp.float32, -bound, bound)

    out = pool_aggregator(nodes, neighs, P, W,
                          weighted=False, activate=False,
                          not_final_layer=True, residue=True)
    out = jax.block_until_ready(out)
    assert out.shape == (n, out_dim)

    # Pure-JAX f32 reference of the module forward (concate=False, weighted=False,
    # activate=False, residue=True).  Loose tolerance covers the bf16 MXU operands.
    def ref(nodes, neighs, P, W):
        merge = jnp.concatenate([neighs, nodes[:, None, :]], axis=1)   # (n, k+1, d)
        h = jnp.einsum('nkd,de->nke', merge, P)
        pooled = jnp.max(h, axis=1)
        new = pooled @ W
        new = new / jnp.maximum(jnp.linalg.norm(new, axis=1, keepdims=True), 1e-12)
        res = nodes + new
        return res / jnp.maximum(jnp.linalg.norm(res, axis=1, keepdims=True), 1e-12)

    expected = ref(nodes, neighs, P, W)
    assert bool(jnp.allclose(out, expected, atol=3e-2, rtol=3e-2)), float(
        jnp.max(jnp.abs(out - expected)))
    print("KERNEL_OK")
</pallas_src>

<mosaic_0001>
module attributes {stable_mosaic.version = 11 : i64} {
  func.func @pool_aggregator_kernel(%arg0: i32, %arg1: memref<128x128xf32, #tpu.memory_space<vmem>>, %arg2: memref<128x128xf32, #tpu.memory_space<vmem>>, %arg3: memref<32x128xbf16, #tpu.memory_space<vmem>>, %arg4: memref<128x128xbf16, #tpu.memory_space<vmem>>, %arg5: memref<128x128xf32, #tpu.memory_space<vmem>>) attributes {dimension_semantics = [#tpu.dimension_semantics<parallel>], iteration_bounds = array<i64: 1>, scalar_prefetch = 0 : i64, scratch_operands = 0 : i64, tpu.core_type = #tpu.core_type<tc>, window_params = [{transform_indices = @transform_0, window_bounds = array<i64: 128, 128>}, {transform_indices = @transform_1, window_bounds = array<i64: 128, 128>}, {pipeline_mode = #tpu.pipeline_mode<synchronous>, transform_indices = @transform_2, window_bounds = array<i64: 32, 128>}, {pipeline_mode = #tpu.pipeline_mode<synchronous>, transform_indices = @transform_3, window_bounds = array<i64: 128, 128>}, {transform_indices = @transform_4, window_bounds = array<i64: 128, 128>}]} {
    %c0 = arith.constant 0 : index
    %c0_0 = arith.constant 0 : index
    %0 = vector.load %arg1[%c0, %c0_0] : memref<128x128xf32, #tpu.memory_space<vmem>>, vector<128x128xf32>
    %1 = vector.extract_strided_slice %0 {offsets = [0, 0], sizes = [128, 32], strides = [1, 1]} : vector<128x128xf32> to vector<128x32xf32>
    %c0_1 = arith.constant 0 : index
    %c0_2 = arith.constant 0 : index
    %2 = vector.load %arg3[%c0_1, %c0_2] : memref<32x128xbf16, #tpu.memory_space<vmem>>, vector<32x128xbf16>
    %c0_3 = arith.constant 0 : index
    %c0_4 = arith.constant 0 : index
    %3 = vector.load %arg4[%c0_3, %c0_4] : memref<128x128xbf16, #tpu.memory_space<vmem>>, vector<128x128xbf16>
    %4 = arith.truncf %1 : vector<128x32xf32> to vector<128x32xbf16>
    %cst = arith.constant dense<0.000000e+00> : vector<128x128xf32>
    %5 = tpu.matmul %4, %2, %cst {dimension_numbers = #tpu.dot_dimension_numbers<[1], [0], [0], [1], [0, 0, 1, 1], [], []>} : vector<128x32xbf16>, vector<32x128xbf16>, vector<128x128xf32> -> vector<128x128xf32>
    %c0_5 = arith.constant 0 : index
    %c0_6 = arith.constant 0 : index
    %6 = vector.load %arg2[%c0_5, %c0_6] : memref<128x128xf32, #tpu.memory_space<vmem>>, vector<128x32xf32>
    %7 = arith.truncf %6 : vector<128x32xf32> to vector<128x32xbf16>
    %cst_7 = arith.constant dense<0.000000e+00> : vector<128x128xf32>
    %8 = tpu.matmul %7, %2, %cst_7 {dimension_numbers = #tpu.dot_dimension_numbers<[1], [0], [0], [1], [0, 0, 1, 1], [], []>} : vector<128x32xbf16>, vector<32x128xbf16>, vector<128x128xf32> -> vector<128x128xf32>
    %9 = arith.maximumf %5, %8 : vector<128x128xf32>
    %c0_8 = arith.constant 0 : index
    %c32 = arith.constant 32 : index
    %10 = vector.load %arg2[%c0_8, %c32] : memref<128x128xf32, #tpu.memory_space<vmem>>, vector<128x32xf32>
    %11 = arith.truncf %10 : vector<128x32xf32> to vector<128x32xbf16>
    %cst_9 = arith.constant dense<0.000000e+00> : vector<128x128xf32>
    %12 = tpu.matmul %11, %2, %cst_9 {dimension_numbers = #tpu.dot_dimension_numbers<[1], [0], [0], [1], [0, 0, 1, 1], [], []>} : vector<128x32xbf16>, vector<32x128xbf16>, vector<128x128xf32> -> vector<128x128xf32>
    %13 = arith.maximumf %9, %12 : vector<128x128xf32>
    %c0_10 = arith.constant 0 : index
    %c64 = arith.constant 64 : index
    %14 = vector.load %arg2[%c0_10, %c64] : memref<128x128xf32, #tpu.memory_space<vmem>>, vector<128x32xf32>
    %15 = arith.truncf %14 : vector<128x32xf32> to vector<128x32xbf16>
    %cst_11 = arith.constant dense<0.000000e+00> : vector<128x128xf32>
    %16 = tpu.matmul %15, %2, %cst_11 {dimension_numbers = #tpu.dot_dimension_numbers<[1], [0], [0], [1], [0, 0, 1, 1], [], []>} : vector<128x32xbf16>, vector<32x128xbf16>, vector<128x128xf32> -> vector<128x128xf32>
    %17 = arith.maximumf %13, %16 : vector<128x128xf32>
    %c0_12 = arith.constant 0 : index
    %c96 = arith.constant 96 : index
    %18 = vector.load %arg2[%c0_12, %c96] : memref<128x128xf32, #tpu.memory_space<vmem>>, vector<128x32xf32>
    %19 = arith.truncf %18 : vector<128x32xf32> to vector<128x32xbf16>
    %cst_13 = arith.constant dense<0.000000e+00> : vector<128x128xf32>
    %20 = tpu.matmul %19, %2, %cst_13 {dimension_numbers = #tpu.dot_dimension_numbers<[1], [0], [0], [1], [0, 0, 1, 1], [], []>} : vector<128x32xbf16>, vector<32x128xbf16>, vector<128x128xf32> -> vector<128x128xf32>
    %21 = arith.maximumf %17, %20 : vector<128x128xf32>
    %22 = arith.truncf %21 : vector<128x128xf32> to vector<128x128xbf16>
    %cst_14 = arith.constant dense<0.000000e+00> : vector<128x128xf32>
    %23 = tpu.matmul %22, %3, %cst_14 {dimension_numbers = #tpu.dot_dimension_numbers<[1], [0], [0], [1], [0, 0, 1, 1], [], []>} : vector<128x128xbf16>, vector<128x128xbf16>, vector<128x128xf32> -> vector<128x128xf32>
    %24 = arith.mulf %23, %23 : vector<128x128xf32>
    %cst_15 = arith.constant dense<0.000000e+00> : vector<128xf32>
    %25 = vector.multi_reduction <add>, %24, %cst_15 [1] : vector<128x128xf32> to vector<128xf32>
    %26 = vector.shape_cast %25 : vector<128xf32> to vector<128x1xf32>
    %cst_16 = arith.constant 1.000000e-24 : f32
    %27 = vector.broadcast %cst_16 : f32 to vector<128x1xf32>
    %28 = arith.maximumf %26, %27 : vector<128x1xf32>
    %29 = math.rsqrt %28 : vector<128x1xf32>
    %30 = vector.broadcast %29 : vector<128x1xf32> to vector<128x128xf32>
    %31 = arith.mulf %23, %30 : vector<128x128xf32>
    %32 = arith.addf %0, %31 : vector<128x128xf32>
    %33 = arith.mulf %32, %32 : vector<128x128xf32>
    %cst_17 = arith.constant dense<0.000000e+00> : vector<128xf32>
    %34 = vector.multi_reduction <add>, %33, %cst_17 [1] : vector<128x128xf32> to vector<128xf32>
    %35 = vector.shape_cast %34 : vector<128xf32> to vector<128x1xf32>
    %cst_18 = arith.constant 1.000000e-24 : f32
    %36 = vector.broadcast %cst_18 : f32 to vector<128x1xf32>
    %37 = arith.maximumf %35, %36 : vector<128x1xf32>
    %38 = math.rsqrt %37 : vector<128x1xf32>
    %39 = vector.broadcast %38 : vector<128x1xf32> to vector<128x128xf32>
    %40 = arith.mulf %32, %39 : vector<128x128xf32>
    %c0_19 = arith.constant 0 : index
    %c0_20 = arith.constant 0 : index
    %41 = vector.load %arg5[%c0_19, %c0_20] : memref<128x128xf32, #tpu.memory_space<vmem>>, vector<128x128xf32>
    tpu.vector_store %arg5[%c0_19, %c0_20], %40 {strides = array<i32>} : memref<128x128xf32, #tpu.memory_space<vmem>>, vector<128x128xf32>,
    return
  }
  func.func @transform_0(%arg0: i32) -> (i32, i32) {
    %c0_i32 = arith.constant 0 : i32
    %c0_i32_0 = arith.constant 0 : i32
    return %arg0, %c0_i32 : i32, i32
  }
  func.func @transform_1(%arg0: i32) -> (i32, i32) {
    %c0_i32 = arith.constant 0 : i32
    %c0_i32_0 = arith.constant 0 : i32
    return %arg0, %c0_i32 : i32, i32
  }
  func.func @transform_2(%arg0: i32) -> (i32, i32) {
    %c0_i32 = arith.constant 0 : i32
    %c0_i32_0 = arith.constant 0 : i32
    %c0_i32_1 = arith.constant 0 : i32
    return %c0_i32, %c0_i32_0 : i32, i32
  }
  func.func @transform_3(%arg0: i32) -> (i32, i32) {
    %c0_i32 = arith.constant 0 : i32
    %c0_i32_0 = arith.constant 0 : i32
    %c0_i32_1 = arith.constant 0 : i32
    return %c0_i32, %c0_i32_0 : i32, i32
  }
  func.func @transform_4(%arg0: i32) -> (i32, i32) {
    %c0_i32 = arith.constant 0 : i32
    %c0_i32_0 = arith.constant 0 : i32
    return %arg0, %c0_i32 : i32, i32
  }
}

</mosaic_0001>

<llo_original>
// kernel: tpu_custom_call.1
$region0: #{tpu_custom_call.1}
  #allocation0 [shape = 'u32[]', space=smem, size = 0x4, offset = 0x4, fixed_abs, tag = 'smem constant byte address 0x4 - core index']
  #allocation1 [shape = 'u32[144,128]{1,0:T(1,128)}', space=vmem, size = 0x12000, scoped, tag = 'internal scratch']
  %s0 = inlined_call_operand.hbm [shape: f32[128,128], index: 0, kind: input, shape index: {}]
  %s1 = inlined_call_operand.hbm [shape: f32[128,128], index: 1, kind: input, shape index: {}]
  %s2 = inlined_call_operand.hbm [shape: bf16[32,128], index: 2, kind: input, shape index: {}]
  %s3 = inlined_call_operand.hbm [shape: bf16[128,128], index: 3, kind: input, shape index: {}]
  %s4 = inlined_call_operand.hbm [shape: f32[128,128], index: 4, kind: output, shape index: {}]
  %s5 = sld [smem:[#allocation0]]
  $region42: #{tpu_custom_call.1} parent=0
    _
  %s7 = ssub.s32 1, %s5
  %s8 = scalar_select 0, %s7, %s5
  $region1: #{tpu_custom_call.1} parent=0
    #allocation2 [shape = 'u8[65536]{0}', space=vmem, size = 0x10000, scoped, tag = 'input window, operand 0, single buffered']
    #allocation3 [shape = 's32[1]{0}', space=sflag, size = 0x4, scoped, tag = 'scoped memory for tpu_custom_call.1']
    #allocation4 [shape = 's32[1]{0}', space=sflag, size = 0x4, scoped, tag = 'scoped memory for tpu_custom_call.1']
    #allocation5 [shape = 'u8[65536]{0}', space=vmem, size = 0x10000, scoped, tag = 'input window, operand 1, single buffered']
    #allocation6 [shape = 's32[1]{0}', space=sflag, size = 0x4, scoped, tag = 'scoped memory for tpu_custom_call.1']
    #allocation7 [shape = 'u8[8192]{0}', space=vmem, size = 0x2000, scoped, tag = 'input window, operand 2, single buffered']
    #allocation8 [shape = 'u8[32768]{0}', space=vmem, size = 0x8000, scoped, tag = 'input window, operand 3, single buffered']
    #allocation9 [shape = 's32[1]{0}', space=sflag, size = 0x4, scoped, tag = 'scoped memory for tpu_custom_call.1']
    #allocation10 [shape = 'u8[65536]{0}', space=vmem, size = 0x10000, scoped, tag = 'output window, operand 0, single buffered']
    %9 = vsyncpa [#allocation3], 0
    %10 = vsyncpa [#allocation6], 0
    %11 = vsyncpa [#allocation9], 0
    %12 = vsyncpa [#allocation4], 0
    // Predicated region
    $region2: #{tpu_custom_call.1} parent=1 // pred_check
      _
    $region3: #{tpu_custom_call.1} parent=1 // pred_check_branch
      %14 = sbr.rel (0) target = $region5
    $region4: #{tpu_custom_call.1} parent=1 // pred_region
      %s16 = ssub.s32 2048, 2048
      %17 = vsyncadd [#allocation3], %s16
      %s18 = sshll.u32 [#allocation2], 4
      %s19 = int_to_ptr.vmem [resolvable:$true] %s18
      %24 = dma.hbm_to_vmem [thread:$0]  %s0, 2048, %s19, [#allocation3], 128, 128, 8
    $region5: #{tpu_custom_call.1} parent=1 // pred_fallthru
      _
    // Predicated region
    $region6: #{tpu_custom_call.1} parent=1 // pred_check
      _
    $region7: #{tpu_custom_call.1} parent=1 // pred_check_branch
      %26 = sbr.rel (0) target = $region9
    $region8: #{tpu_custom_call.1} parent=1 // pred_region
      %s28 = ssub.s32 2048, 2048
      %29 = vsyncadd [#allocation6], %s28
      %s30 = sshll.u32 [#allocation5], 4
      %s31 = int_to_ptr.vmem [resolvable:$true] %s30
      %36 = dma.hbm_to_vmem [thread:$0]  %s1, 2048, %s31, [#allocation6], 128, 128, 8
    $region9: #{tpu_custom_call.1} parent=1 // pred_fallthru
      _
    // Predicated region
    $region10: #{tpu_custom_call.1} parent=1 // pred_check
      _
    $region11: #{tpu_custom_call.1} parent=1 // pred_check_branch
      %38 = sbr.rel (0) target = $region13
    $region12: #{tpu_custom_call.1} parent=1 // pred_region
      %s40 = ssub.s32 256, 256
      %41 = vsyncadd [#allocation6], %s40
      %s42 = sshll.u32 [#allocation7], 4
      %s43 = int_to_ptr.vmem [resolvable:$true] %s42
      %48 = dma.hbm_to_vmem [thread:$0]  %s2, 256, %s43, [#allocation6], 64, 64, 4
    $region13: #{tpu_custom_call.1} parent=1 // pred_fallthru
      _
    // Predicated region
    $region14: #{tpu_custom_call.1} parent=1 // pred_check
      _
    $region15: #{tpu_custom_call.1} parent=1 // pred_check_branch
      %50 = sbr.rel (0) target = $region17
    $region16: #{tpu_custom_call.1} parent=1 // pred_region
      %s52 = ssub.s32 1024, 1024
      %53 = vsyncadd [#allocation9], %s52
      %s54 = sshll.u32 [#allocation8], 4
      %s55 = int_to_ptr.vmem [resolvable:$true] %s54
      %60 = dma.hbm_to_vmem [thread:$0]  %s3, 1024, %s55, [#allocation9], 64, 64, 4
    $region17: #{tpu_custom_call.1} parent=1 // pred_fallthru
      _
    // Predicated region
    $region18: #{tpu_custom_call.1} parent=1 // pred_check
      _
    $region19: #{tpu_custom_call.1} parent=1 // pred_check_branch
      %62 = sbr.rel (0) target = $region21
    $region20: #{tpu_custom_call.1} parent=1 // pred_region
      %63 = dma.done [#allocation3], 2048
    $region21: #{tpu_custom_call.1} parent=1 // pred_fallthru
      _
    // Predicated region
    $region22: #{tpu_custom_call.1} parent=1 // pred_check
      _
    $region23: #{tpu_custom_call.1} parent=1 // pred_check_branch
      %65 = sbr.rel (0) target = $region25
    $region24: #{tpu_custom_call.1} parent=1 // pred_region
      %66 = dma.done [#allocation6], 2048
    $region25: #{tpu_custom_call.1} parent=1 // pred_fallthru
      _
    // Predicated region
    $region26: #{tpu_custom_call.1} parent=1 // pred_check
      _
    $region27: #{tpu_custom_call.1} parent=1 // pred_check_branch
      %68 = sbr.rel (0) target = $region29
    $region28: #{tpu_custom_call.1} parent=1 // pred_region
      %69 = dma.done [#allocation6], 256
    $region29: #{tpu_custom_call.1} parent=1 // pred_fallthru
      _
    // Predicated region
    $region30: #{tpu_custom_call.1} parent=1 // pred_check
      _
    $region31: #{tpu_custom_call.1} parent=1 // pred_check_branch
      %71 = sbr.rel (0) target = $region33
    $region32: #{tpu_custom_call.1} parent=1 // pred_region
      %72 = dma.done [#allocation9], 1024
    $region33: #{tpu_custom_call.1} parent=1 // pred_fallthru
      _
    %v74 = vld [vmem:[#allocation2] sm:$0xff]
    %v75 = vld [vmem:[#allocation2 + $0x8] sm:$0xff]
    %v76 = vld [vmem:[#allocation2 + $0x10] sm:$0xff]
    %v77 = vld [vmem:[#allocation2 + $0x18] sm:$0xff]
    %v78 = vld [vmem:[#allocation2 + $0x20] sm:$0xff]
    %v79 = vld [vmem:[#allocation2 + $0x28] sm:$0xff]
    %v80 = vld [vmem:[#allocation2 + $0x30] sm:$0xff]
    %v81 = vld [vmem:[#allocation2 + $0x38] sm:$0xff]
    %v82 = vld [vmem:[#allocation2 + $0x40] sm:$0xff]
    %v83 = vld [vmem:[#allocation2 + $0x48] sm:$0xff]
    %v84 = vld [vmem:[#allocation2 + $0x50] sm:$0xff]
    %v85 = vld [vmem:[#allocation2 + $0x58] sm:$0xff]
    %v86 = vld [vmem:[#allocation2 + $0x60] sm:$0xff]
    %v87 = vld [vmem:[#allocation2 + $0x68] sm:$0xff]
    %v88 = vld [vmem:[#allocation2 + $0x70] sm:$0xff]
    %v89 = vld [vmem:[#allocation2 + $0x78] sm:$0xff]
    %v90 = vld [vmem:[#allocation7] sm:$0xf]
    %v91 = vld [vmem:[#allocation7 + $0x4] sm:$0xf]
    %v92 = vld [vmem:[#allocation7 + $0x8] sm:$0xf]
    %v93 = vld [vmem:[#allocation7 + $0xc] sm:$0xf]
    %v94 = vld [vmem:[#allocation8] sm:$0xf]
    %v95 = vld [vmem:[#allocation8 + $0x4] sm:$0xf]
    %v96 = vld [vmem:[#allocation8 + $0x8] sm:$0xf]
    %v97 = vld [vmem:[#allocation8 + $0xc] sm:$0xf]
    %v98 = vld [vmem:[#allocation8 + $0x10] sm:$0xf]
    %v99 = vld [vmem:[#allocation8 + $0x14] sm:$0xf]
    %v100 = vld [vmem:[#allocation8 + $0x18] sm:$0xf]
    %v101 = vld [vmem:[#allocation8 + $0x1c] sm:$0xf]
    %v102 = vld [vmem:[#allocation8 + $0x20] sm:$0xf]
    %v103 = vld [vmem:[#allocation8 + $0x24] sm:$0xf]
    %v104 = vld [vmem:[#allocation8 + $0x28] sm:$0xf]
    %v105 = vld [vmem:[#allocation8 + $0x2c] sm:$0xf]
    %v106 = vld [vmem:[#allocation8 + $0x30] sm:$0xf]
    %v107 = vld [vmem:[#allocation8 + $0x34] sm:$0xf]
    %v108 = vld [vmem:[#allocation8 + $0x38] sm:$0xf]
    %v109 = vld [vmem:[#allocation8 + $0x3c] sm:$0xf]
    %v110 = vpack.c.bf16 %v75, %v74
    %v111 = vpack.c.bf16 %v77, %v76
    %v112 = vpack.c.bf16 %v79, %v78
    %v113 = vpack.c.bf16 %v81, %v80
    %v114 = vpack.c.bf16 %v83, %v82
    %v115 = vpack.c.bf16 %v85, %v84
    %v116 = vpack.c.bf16 %v87, %v86
    %v117 = vpack.c.bf16 %v89, %v88
    %v122 = vunpack.c.l.b16 %v90
    %v123 = vunpack.c.l.b16 %v91
    %v124 = vunpack.c.l.b16 %v92
    %v125 = vunpack.c.l.b16 %v93
    %v126 = vpack.c.b16 %v123, %v122
    %v127 = vpack.c.b16 %v125, %v124
    %vm130 = vcmask 261120
    %v132 = vsel %vm130, %v110, 0
    %v135 = vsel %vm130, %v111, 0
    %v138 = vsel %vm130, %v112, 0
    %v141 = vsel %vm130, %v113, 0
    %v144 = vsel %vm130, %v114, 0
    %v147 = vsel %vm130, %v115, 0
    %v150 = vsel %vm130, %v116, 0
    %v153 = vsel %vm130, %v117, 0
    %155 = vmatprep.subr.bf16.mxu0 0
    %156 = vmatpush1.bf16.msra.mxu0 0
    %157 = vmatprep.subr.bf16.mxu0 0
    %158 = vmatpush1.bf16.msra.mxu0 0
    %159 = vmatprep.subr.bf16.mxu0 0
    %160 = vmatpush1.bf16.msra.mxu0 0
    %161 = vmatprep.subr.bf16.mxu0 0
    %162 = vmatpush1.bf16.msra.mxu0 0
    %163 = vmatprep.subr.bf16.mxu0 0
    %164 = vmatpush1.bf16.msra.mxu0 0
    %165 = vmatprep.subr.bf16.mxu0 0
    %166 = vmatpush1.bf16.msra.mxu0 0
    %167 = vmatprep.subr.bf16.mxu0 0
    %168 = vmatpush1.bf16.msra.mxu0 %v127
    %169 = vmatprep.subr.bf16.mxu0 0
    %170 = vmatpush1.bf16.msra.mxu0 %v126
    %171 = vmatprep.subr.bf16.mxu0 0
    %172 = vmatpush2.bf16.msra.mxu0 0
    %173 = vmatprep.subr.bf16.mxu0 0
    %174 = vmatpush2.bf16.msra.mxu0 0
    %175 = vmatprep.subr.bf16.mxu0 0
    %176 = vmatpush2.bf16.msra.mxu0 0
    %177 = vmatprep.subr.bf16.mxu0 0
    %178 = vmatpush2.bf16.msra.mxu0 0
    %179 = vmatprep.subr.bf16.mxu0 0
    %180 = vmatpush2.bf16.msra.mxu0 0
    %181 = vmatprep.subr.bf16.mxu0 0
    %182 = vmatpush2.bf16.msra.mxu0 0
    %183 = vmatprep.subr.bf16.mxu0 0
    %184 = vmatpush2.bf16.msra.mxu0 0
    %185 = vmatprep.subr.bf16.mxu0 0
    %186 = vmatpush2.bf16.msra.mxu0 0
    %187 = vmatprep.mubr.bf16.mxu0 0
    %188 = vmatmul.mubr.bf16.gmra.mxu0 %v132
    %v189 = vpop.f32.mrf.mxu0
    %v190 = vadd.f32 0.0, %v189
    %v191 = vpop.f32.mrf.mxu0
    %v192 = vpop.f32.mrf.mxu0
    %v193 = vadd.f32 0.0, %v192
    %v194 = vpop.f32.mrf.mxu0
    %195 = vmatprep.mubr.bf16.mxu0 0
    %196 = vmatmul.mubr.bf16.gmra.mxu0 %v135
    %v197 = vpop.f32.mrf.mxu0
    %v198 = vadd.f32 0.0, %v197
    %v199 = vpop.f32.mrf.mxu0
    %v200 = vpop.f32.mrf.mxu0
    %v201 = vadd.f32 0.0, %v200
    %v202 = vpop.f32.mrf.mxu0
    %203 = vmatprep.mubr.bf16.mxu0 0
    %204 = vmatmul.mubr.bf16.gmra.mxu0 %v138
    %v205 = vpop.f32.mrf.mxu0
    %v206 = vadd.f32 0.0, %v205
    %v207 = vpop.f32.mrf.mxu0
    %v208 = vpop.f32.mrf.mxu0
    %v209 = vadd.f32 0.0, %v208
    %v210 = vpop.f32.mrf.mxu0
    %211 = vmatprep.mubr.bf16.mxu0 0
    %212 = vmatmul.mubr.bf16.gmra.mxu0 %v141
    %v213 = vpop.f32.mrf.mxu0
    %v214 = vadd.f32 0.0, %v213
    %v215 = vpop.f32.mrf.mxu0
    %v216 = vpop.f32.mrf.mxu0
    %v217 = vadd.f32 0.0, %v216
    %v218 = vpop.f32.mrf.mxu0
    %219 = vmatprep.mubr.bf16.mxu0 0
    %220 = vmatmul.mubr.bf16.gmra.mxu0 %v144
    %v221 = vpop.f32.mrf.mxu0
    %v222 = vadd.f32 0.0, %v221
    %v223 = vpop.f32.mrf.mxu0
    %v224 = vpop.f32.mrf.mxu0
    %v225 = vadd.f32 0.0, %v224
    %v226 = vpop.f32.mrf.mxu0
    %227 = vmatprep.mubr.bf16.mxu0 0
    %228 = vmatmul.mubr.bf16.gmra.mxu0 %v147
    %v229 = vpop.f32.mrf.mxu0
    %v230 = vadd.f32 0.0, %v229
    %v231 = vpop.f32.mrf.mxu0
    %v232 = vpop.f32.mrf.mxu0
    %v233 = vadd.f32 0.0, %v232
    %v234 = vpop.f32.mrf.mxu0
    %235 = vmatprep.mubr.bf16.mxu0 0
    %236 = vmatmul.mubr.bf16.gmra.mxu0 %v150
    %v237 = vpop.f32.mrf.mxu0
    %v238 = vadd.f32 0.0, %v237
    %v239 = vpop.f32.mrf.mxu0
    %v240 = vpop.f32.mrf.mxu0
    %v241 = vadd.f32 0.0, %v240
    %v242 = vpop.f32.mrf.mxu0
    %243 = vmatprep.mubr.bf16.mxu0 0
    %244 = vmatmul.mubr.bf16.gmra.mxu0 %v153
    %v245 = vpop.f32.mrf.mxu0
    %v246 = vadd.f32 0.0, %v245
    %v247 = vpop.f32.mrf.mxu0
    %v248 = vpop.f32.mrf.mxu0
    %v249 = vadd.f32 0.0, %v248
    %v250 = vpop.f32.mrf.mxu0
    %251 = vdwg.mxu0
    %v252 = vld [vmem:[#allocation5] sm:$0xff]
    %v253 = vld [vmem:[#allocation5 + $0x8] sm:$0xff]
    %v254 = vld [vmem:[#allocation5 + $0x10] sm:$0xff]
    %v255 = vld [vmem:[#allocation5 + $0x18] sm:$0xff]
    %v256 = vld [vmem:[#allocation5 + $0x20] sm:$0xff]
    %v257 = vld [vmem:[#allocation5 + $0x28] sm:$0xff]
    %v258 = vld [vmem:[#allocation5 + $0x30] sm:$0xff]
    %v259 = vld [vmem:[#allocation5 + $0x38] sm:$0xff]
    %v260 = vld [vmem:[#allocation5 + $0x40] sm:$0xff]
    %v261 = vld [vmem:[#allocation5 + $0x48] sm:$0xff]
    %v262 = vld [vmem:[#allocation5 + $0x50] sm:$0xff]
    %v263 = vld [vmem:[#allocation5 + $0x58] sm:$0xff]
    %v264 = vld [vmem:[#allocation5 + $0x60] sm:$0xff]
    %v265 = vld [vmem:[#allocation5 + $0x68] sm:$0xff]
    %v266 = vld [vmem:[#allocation5 + $0x70] sm:$0xff]
    %v267 = vld [vmem:[#allocation5 + $0x78] sm:$0xff]
    %v268 = vpack.c.bf16 %v253, %v252
    %v269 = vpack.c.bf16 %v255, %v254
    %v270 = vpack.c.bf16 %v257, %v256
    %v271 = vpack.c.bf16 %v259, %v258
    %v272 = vpack.c.bf16 %v261, %v260
    %v273 = vpack.c.bf16 %v263, %v262
    %v274 = vpack.c.bf16 %v265, %v264
    %v275 = vpack.c.bf16 %v267, %v266
    %v277 = vsel %vm130, %v268, 0
    %v280 = vsel %vm130, %v269, 0
    %v283 = vsel %vm130, %v270, 0
    %v286 = vsel %vm130, %v271, 0
    %v289 = vsel %vm130, %v272, 0
    %v292 = vsel %vm130, %v273, 0
    %v295 = vsel %vm130, %v274, 0
    %v298 = vsel %vm130, %v275, 0
    %300 = vmatprep.subr.bf16.mxu0 0
    %301 = vmatpush1.bf16.msra.mxu0 0
    %302 = vmatprep.subr.bf16.mxu0 0
    %303 = vmatpush1.bf16.msra.mxu0 0
    %304 = vmatprep.subr.bf16.mxu0 0
    %305 = vmatpush1.bf16.msra.mxu0 0
    %306 = vmatprep.subr.bf16.mxu0 0
    %307 = vmatpush1.bf16.msra.mxu0 0
    %308 = vmatprep.subr.bf16.mxu0 0
    %309 = vmatpush1.bf16.msra.mxu0 0
    %310 = vmatprep.subr.bf16.mxu0 0
    %311 = vmatpush1.bf16.msra.mxu0 0
    %312 = vmatprep.subr.bf16.mxu0 0
    %313 = vmatpush1.bf16.msra.mxu0 %v127
    %314 = vmatprep.subr.bf16.mxu0 0
    %315 = vmatpush1.bf16.msra.mxu0 %v126
    %316 = vmatprep.subr.bf16.mxu0 0
    %317 = vmatpush2.bf16.msra.mxu0 0
    %318 = vmatprep.subr.bf16.mxu0 0
    %319 = vmatpush2.bf16.msra.mxu0 0
    %320 = vmatprep.subr.bf16.mxu0 0
    %321 = vmatpush2.bf16.msra.mxu0 0
    %322 = vmatprep.subr.bf16.mxu0 0
    %323 = vmatpush2.bf16.msra.mxu0 0
    %324 = vmatprep.subr.bf16.mxu0 0
    %325 = vmatpush2.bf16.msra.mxu0 0
    %326 = vmatprep.subr.bf16.mxu0 0
    %327 = vmatpush2.bf16.msra.mxu0 0
    %328 = vmatprep.subr.bf16.mxu0 0
    %329 = vmatpush2.bf16.msra.mxu0 0
    %330 = vmatprep.subr.bf16.mxu0 0
    %331 = vmatpush2.bf16.msra.mxu0 0
    %332 = vmatprep.mubr.bf16.mxu0 0
    %333 = vmatmul.mubr.bf16.gmra.mxu0 %v277
    %v334 = vpop.f32.mrf.mxu0
    %v335 = vadd.f32 0.0, %v334
    %v336 = vpop.f32.mrf.mxu0
    %v337 = vpop.f32.mrf.mxu0
    %v338 = vadd.f32 0.0, %v337
    %v339 = vpop.f32.mrf.mxu0
    %340 = vmatprep.mubr.bf16.mxu0 0
    %341 = vmatmul.mubr.bf16.gmra.mxu0 %v280
    %v342 = vpop.f32.mrf.mxu0
    %v343 = vadd.f32 0.0, %v342
    %v344 = vpop.f32.mrf.mxu0
    %v345 = vpop.f32.mrf.mxu0
    %v346 = vadd.f32 0.0, %v345
    %v347 = vpop.f32.mrf.mxu0
    %348 = vmatprep.mubr.bf16.mxu0 0
    %349 = vmatmul.mubr.bf16.gmra.mxu0 %v283
    %v350 = vpop.f32.mrf.mxu0
    %v351 = vadd.f32 0.0, %v350
    %v352 = vpop.f32.mrf.mxu0
    %v353 = vpop.f32.mrf.mxu0
    %v354 = vadd.f32 0.0, %v353
    %v355 = vpop.f32.mrf.mxu0
    %356 = vmatprep.mubr.bf16.mxu0 0
    %357 = vmatmul.mubr.bf16.gmra.mxu0 %v286
    %v358 = vpop.f32.mrf.mxu0
    %v359 = vadd.f32 0.0, %v358
    %v360 = vpop.f32.mrf.mxu0
    %v361 = vpop.f32.mrf.mxu0
    %v362 = vadd.f32 0.0, %v361
    %v363 = vpop.f32.mrf.mxu0
    %364 = vmatprep.mubr.bf16.mxu0 0
    %365 = vmatmul.mubr.bf16.gmra.mxu0 %v289
    %v366 = vpop.f32.mrf.mxu0
    %v367 = vadd.f32 0.0, %v366
    %v368 = vpop.f32.mrf.mxu0
    %v369 = vpop.f32.mrf.mxu0
    %v370 = vadd.f32 0.0, %v369
    %v371 = vpop.f32.mrf.mxu0
    %372 = vmatprep.mubr.bf16.mxu0 0
    %373 = vmatmul.mubr.bf16.gmra.mxu0 %v292
    %v374 = vpop.f32.mrf.mxu0
    %v375 = vadd.f32 0.0, %v374
    %v376 = vpop.f32.mrf.mxu0
    %v377 = vpop.f32.mrf.mxu0
    %v378 = vadd.f32 0.0, %v377
    %v379 = vpop.f32.mrf.mxu0
    %380 = vmatprep.mubr.bf16.mxu0 0
    %381 = vmatmul.mubr.bf16.gmra.mxu0 %v295
    %v382 = vpop.f32.mrf.mxu0
    %v383 = vadd.f32 0.0, %v382
    %v384 = vpop.f32.mrf.mxu0
    %v385 = vpop.f32.mrf.mxu0
    %v386 = vadd.f32 0.0, %v385
    %v387 = vpop.f32.mrf.mxu0
    %388 = vmatprep.mubr.bf16.mxu0 0
    %389 = vmatmul.mubr.bf16.gmra.mxu0 %v298
    %v390 = vpop.f32.mrf.mxu0
    %v391 = vadd.f32 0.0, %v390
    %v392 = vpop.f32.mrf.mxu0
    %v393 = vpop.f32.mrf.mxu0
    %v394 = vadd.f32 0.0, %v393
    %v395 = vpop.f32.mrf.mxu0
    %396 = vdwg.mxu0
    %v397 = vmax.f32 %v190, %v335
    %v398 = vmax.f32 %v193, %v338
    %v399 = vmax.f32 %v198, %v343
    %v400 = vmax.f32 %v201, %v346
    %v401 = vmax.f32 %v206, %v351
    %v402 = vmax.f32 %v209, %v354
    %v403 = vmax.f32 %v214, %v359
    %v404 = vmax.f32 %v217, %v362
    %v405 = vmax.f32 %v222, %v367
    %v406 = vmax.f32 %v225, %v370
    %v407 = vmax.f32 %v230, %v375
    %v408 = vmax.f32 %v233, %v378
    %v409 = vmax.f32 %v238, %v383
    %v410 = vmax.f32 %v241, %v386
    %v411 = vmax.f32 %v246, %v391
    %v412 = vmax.f32 %v249, %v394
    %421 = vrot.lane.b32.xlu0 %v268, 96
    %v422 = vpop.permute.xlu0 %421
    %423 = vrot.lane.b32.xlu0 %v269, 96
    %v424 = vpop.permute.xlu0 %423
    %425 = vrot.lane.b32.xlu0 %v270, 96
    %v426 = vpop.permute.xlu0 %425
    %427 = vrot.lane.b32.xlu0 %v271, 96
    %v428 = vpop.permute.xlu0 %427
    %429 = vrot.lane.b32.xlu0 %v272, 96
    %v430 = vpop.permute.xlu0 %429
    %431 = vrot.lane.b32.xlu0 %v273, 96
    %v432 = vpop.permute.xlu0 %431
    %433 = vrot.lane.b32.xlu0 %v274, 96
    %v434 = vpop.permute.xlu0 %433
    %435 = vrot.lane.b32.xlu0 %v275, 96
    %v436 = vpop.permute.xlu0 %435
    %v438 = vsel %vm130, %v422, 0
    %v441 = vsel %vm130, %v424, 0
    %v444 = vsel %vm130, %v426, 0
    %v447 = vsel %vm130, %v428, 0
    %v450 = vsel %vm130, %v430, 0
    %v453 = vsel %vm130, %v432, 0
    %v456 = vsel %vm130, %v434, 0
    %v459 = vsel %vm130, %v436, 0
    %461 = vmatprep.subr.bf16.mxu0 0
    %462 = vmatpush1.bf16.msra.mxu0 0
    %463 = vmatprep.subr.bf16.mxu0 0
    %464 = vmatpush1.bf16.msra.mxu0 0
    %465 = vmatprep.subr.bf16.mxu0 0
    %466 = vmatpush1.bf16.msra.mxu0 0
    %467 = vmatprep.subr.bf16.mxu0 0
    %468 = vmatpush1.bf16.msra.mxu0 0
    %469 = vmatprep.subr.bf16.mxu0 0
    %470 = vmatpush1.bf16.msra.mxu0 0
    %471 = vmatprep.subr.bf16.mxu0 0
    %472 = vmatpush1.bf16.msra.mxu0 0
    %473 = vmatprep.subr.bf16.mxu0 0
    %474 = vmatpush1.bf16.msra.mxu0 %v127
    %475 = vmatprep.subr.bf16.mxu0 0
    %476 = vmatpush1.bf16.msra.mxu0 %v126
    %477 = vmatprep.subr.bf16.mxu0 0
    %478 = vmatpush2.bf16.msra.mxu0 0
    %479 = vmatprep.subr.bf16.mxu0 0
    %480 = vmatpush2.bf16.msra.mxu0 0
    %481 = vmatprep.subr.bf16.mxu0 0
    %482 = vmatpush2.bf16.msra.mxu0 0
    %483 = vmatprep.subr.bf16.mxu0 0
    %484 = vmatpush2.bf16.msra.mxu0 0
    %485 = vmatprep.subr.bf16.mxu0 0
    %486 = vmatpush2.bf16.msra.mxu0 0
    %487 = vmatprep.subr.bf16.mxu0 0
    %488 = vmatpush2.bf16.msra.mxu0 0
    %489 = vmatprep.subr.bf16.mxu0 0
    %490 = vmatpush2.bf16.msra.mxu0 0
    %491 = vmatprep.subr.bf16.mxu0 0
    %492 = vmatpush2.bf16.msra.mxu0 0
    %493 = vmatprep.mubr.bf16.mxu0 0
    %494 = vmatmul.mubr.bf16.gmra.mxu0 %v438
    %v495 = vpop.f32.mrf.mxu0
    %v496 = vadd.f32 0.0, %v495
    %v497 = vpop.f32.mrf.mxu0
    %v498 = vpop.f32.mrf.mxu0
    %v499 = vadd.f32 0.0, %v498
    %v500 = vpop.f32.mrf.mxu0
    %501 = vmatprep.mubr.bf16.mxu0 0
    %502 = vmatmul.mubr.bf16.gmra.mxu0 %v441
    %v503 = vpop.f32.mrf.mxu0
    %v504 = vadd.f32 0.0, %v503
    %v505 = vpop.f32.mrf.mxu0
    %v506 = vpop.f32.mrf.mxu0
    %v507 = vadd.f32 0.0, %v506
    %v508 = vpop.f32.mrf.mxu0
    %509 = vmatprep.mubr.bf16.mxu0 0
    %510 = vmatmul.mubr.bf16.gmra.mxu0 %v444
    %v511 = vpop.f32.mrf.mxu0
    %v512 = vadd.f32 0.0, %v511
    %v513 = vpop.f32.mrf.mxu0
    %v514 = vpop.f32.mrf.mxu0
    %v515 = vadd.f32 0.0, %v514
    %v516 = vpop.f32.mrf.mxu0
    %517 = vmatprep.mubr.bf16.mxu0 0
    %518 = vmatmul.mubr.bf16.gmra.mxu0 %v447
    %v519 = vpop.f32.mrf.mxu0
    %v520 = vadd.f32 0.0, %v519
    %v521 = vpop.f32.mrf.mxu0
    %v522 = vpop.f32.mrf.mxu0
    %v523 = vadd.f32 0.0, %v522
    %v524 = vpop.f32.mrf.mxu0
    %525 = vmatprep.mubr.bf16.mxu0 0
    %526 = vmatmul.mubr.bf16.gmra.mxu0 %v450
    %v527 = vpop.f32.mrf.mxu0
    %v528 = vadd.f32 0.0, %v527
    %v529 = vpop.f32.mrf.mxu0
    %v530 = vpop.f32.mrf.mxu0
    %v531 = vadd.f32 0.0, %v530
    %v532 = vpop.f32.mrf.mxu0
    %533 = vmatprep.mubr.bf16.mxu0 0
    %534 = vmatmul.mubr.bf16.gmra.mxu0 %v453
    %v535 = vpop.f32.mrf.mxu0
    %v536 = vadd.f32 0.0, %v535
    %v537 = vpop.f32.mrf.mxu0
    %v538 = vpop.f32.mrf.mxu0
    %v539 = vadd.f32 0.0, %v538
    %v540 = vpop.f32.mrf.mxu0
    %541 = vmatprep.mubr.bf16.mxu0 0
    %542 = vmatmul.mubr.bf16.gmra.mxu0 %v456
    %v543 = vpop.f32.mrf.mxu0
    %v544 = vadd.f32 0.0, %v543
    %v545 = vpop.f32.mrf.mxu0
    %v546 = vpop.f32.mrf.mxu0
    %v547 = vadd.f32 0.0, %v546
    %v548 = vpop.f32.mrf.mxu0
    %549 = vmatprep.mubr.bf16.mxu0 0
    %550 = vmatmul.mubr.bf16.gmra.mxu0 %v459
    %v551 = vpop.f32.mrf.mxu0
    %v552 = vadd.f32 0.0, %v551
    %v553 = vpop.f32.mrf.mxu0
    %v554 = vpop.f32.mrf.mxu0
    %v555 = vadd.f32 0.0, %v554
    %v556 = vpop.f32.mrf.mxu0
    %557 = vdwg.mxu0
    %v558 = vmax.f32 %v397, %v496
    %v559 = vmax.f32 %v398, %v499
    %v560 = vmax.f32 %v399, %v504
    %v561 = vmax.f32 %v400, %v507
    %v562 = vmax.f32 %v401, %v512
    %v563 = vmax.f32 %v402, %v515
    %v564 = vmax.f32 %v403, %v520
    %v565 = vmax.f32 %v404, %v523
    %v566 = vmax.f32 %v405, %v528
    %v567 = vmax.f32 %v406, %v531
    %v568 = vmax.f32 %v407, %v536
    %v569 = vmax.f32 %v408, %v539
    %v570 = vmax.f32 %v409, %v544
    %v571 = vmax.f32 %v410, %v547
    %v572 = vmax.f32 %v411, %v552
    %v573 = vmax.f32 %v412, %v555
    %574 = vrot.lane.b32.xlu0 %v268, 64
    %v575 = vpop.permute.xlu0 %574
    %576 = vrot.lane.b32.xlu0 %v269, 64
    %v577 = vpop.permute.xlu0 %576
    %578 = vrot.lane.b32.xlu0 %v270, 64
    %v579 = vpop.permute.xlu0 %578
    %580 = vrot.lane.b32.xlu0 %v271, 64
    %v581 = vpop.permute.xlu0 %580
    %582 = vrot.lane.b32.xlu0 %v272, 64
    %v583 = vpop.permute.xlu0 %582
    %584 = vrot.lane.b32.xlu0 %v273, 64
    %v585 = vpop.permute.xlu0 %584
    %586 = vrot.lane.b32.xlu0 %v274, 64
    %v587 = vpop.permute.xlu0 %586
    %588 = vrot.lane.b32.xlu0 %v275, 64
    %v589 = vpop.permute.xlu0 %588
    %v591 = vsel %vm130, %v575, 0
    %v594 = vsel %vm130, %v577, 0
    %v597 = vsel %vm130, %v579, 0
    %v600 = vsel %vm130, %v581, 0
    %v603 = vsel %vm130, %v583, 0
    %v606 = vsel %vm130, %v585, 0
    %v609 = vsel %vm130, %v587, 0
    %v612 = vsel %vm130, %v589, 0
    %614 = vmatprep.subr.bf16.mxu0 0
    %615 = vmatpush1.bf16.msra.mxu0 0
    %616 = vmatprep.subr.bf16.mxu0 0
    %617 = vmatpush1.bf16.msra.mxu0 0
    %618 = vmatprep.subr.bf16.mxu0 0
    %619 = vmatpush1.bf16.msra.mxu0 0
    %620 = vmatprep.subr.bf16.mxu0 0
    %621 = vmatpush1.bf16.msra.mxu0 0
    %622 = vmatprep.subr.bf16.mxu0 0
    %623 = vmatpush1.bf16.msra.mxu0 0
    %624 = vmatprep.subr.bf16.mxu0 0
    %625 = vmatpush1.bf16.msra.mxu0 0
    %626 = vmatprep.subr.bf16.mxu0 0
    %627 = vmatpush1.bf16.msra.mxu0 %v127
    %628 = vmatprep.subr.bf16.mxu0 0
    %629 = vmatpush1.bf16.msra.mxu0 %v126
    %630 = vmatprep.subr.bf16.mxu0 0
    %631 = vmatpush2.bf16.msra.mxu0 0
    %632 = vmatprep.subr.bf16.mxu0 0
    %633 = vmatpush2.bf16.msra.mxu0 0
    %634 = vmatprep.subr.bf16.mxu0 0
    %635 = vmatpush2.bf16.msra.mxu0 0
    %636 = vmatprep.subr.bf16.mxu0 0
    %637 = vmatpush2.bf16.msra.mxu0 0
    %638 = vmatprep.subr.bf16.mxu0 0
    %639 = vmatpush2.bf16.msra.mxu0 0
    %640 = vmatprep.subr.bf16.mxu0 0
    %641 = vmatpush2.bf16.msra.mxu0 0
    %642 = vmatprep.subr.bf16.mxu0 0
    %643 = vmatpush2.bf16.msra.mxu0 0
    %644 = vmatprep.subr.bf16.mxu0 0
    %645 = vmatpush2.bf16.msra.mxu0 0
    %646 = vmatprep.mubr.bf16.mxu0 0
    %647 = vmatmul.mubr.bf16.gmra.mxu0 %v591
    %v648 = vpop.f32.mrf.mxu0
    %v649 = vadd.f32 0.0, %v648
    %v650 = vpop.f32.mrf.mxu0
    %v651 = vpop.f32.mrf.mxu0
    %v652 = vadd.f32 0.0, %v651
    %v653 = vpop.f32.mrf.mxu0
    %654 = vmatprep.mubr.bf16.mxu0 0
    %655 = vmatmul.mubr.bf16.gmra.mxu0 %v594
    %v656 = vpop.f32.mrf.mxu0
    %v657 = vadd.f32 0.0, %v656
    %v658 = vpop.f32.mrf.mxu0
    %v659 = vpop.f32.mrf.mxu0
    %v660 = vadd.f32 0.0, %v659
    %v661 = vpop.f32.mrf.mxu0
    %662 = vmatprep.mubr.bf16.mxu0 0
    %663 = vmatmul.mubr.bf16.gmra.mxu0 %v597
    %v664 = vpop.f32.mrf.mxu0
    %v665 = vadd.f32 0.0, %v664
    %v666 = vpop.f32.mrf.mxu0
    %v667 = vpop.f32.mrf.mxu0
    %v668 = vadd.f32 0.0, %v667
    %v669 = vpop.f32.mrf.mxu0
    %670 = vmatprep.mubr.bf16.mxu0 0
    %671 = vmatmul.mubr.bf16.gmra.mxu0 %v600
    %v672 = vpop.f32.mrf.mxu0
    %v673 = vadd.f32 0.0, %v672
    %v674 = vpop.f32.mrf.mxu0
    %v675 = vpop.f32.mrf.mxu0
    %v676 = vadd.f32 0.0, %v675
    %v677 = vpop.f32.mrf.mxu0
    %678 = vmatprep.mubr.bf16.mxu0 0
    %679 = vmatmul.mubr.bf16.gmra.mxu0 %v603
    %v680 = vpop.f32.mrf.mxu0
    %v681 = vadd.f32 0.0, %v680
    %v682 = vpop.f32.mrf.mxu0
    %v683 = vpop.f32.mrf.mxu0
    %v684 = vadd.f32 0.0, %v683
    %v685 = vpop.f32.mrf.mxu0
    %686 = vmatprep.mubr.bf16.mxu0 0
    %687 = vmatmul.mubr.bf16.gmra.mxu0 %v606
    %v688 = vpop.f32.mrf.mxu0
    %v689 = vadd.f32 0.0, %v688
    %v690 = vpop.f32.mrf.mxu0
    %v691 = vpop.f32.mrf.mxu0
    %v692 = vadd.f32 0.0, %v691
    %v693 = vpop.f32.mrf.mxu0
    %694 = vmatprep.mubr.bf16.mxu0 0
    %695 = vmatmul.mubr.bf16.gmra.mxu0 %v609
    %v696 = vpop.f32.mrf.mxu0
    %v697 = vadd.f32 0.0, %v696
    %v698 = vpop.f32.mrf.mxu0
    %v699 = vpop.f32.mrf.mxu0
    %v700 = vadd.f32 0.0, %v699
    %v701 = vpop.f32.mrf.mxu0
    %702 = vmatprep.mubr.bf16.mxu0 0
    %703 = vmatmul.mubr.bf16.gmra.mxu0 %v612
    %v704 = vpop.f32.mrf.mxu0
    %v705 = vadd.f32 0.0, %v704
    %v706 = vpop.f32.mrf.mxu0
    %v707 = vpop.f32.mrf.mxu0
    %v708 = vadd.f32 0.0, %v707
    %v709 = vpop.f32.mrf.mxu0
    %710 = vdwg.mxu0
    %v711 = vmax.f32 %v558, %v649
    %v712 = vmax.f32 %v559, %v652
    %v713 = vmax.f32 %v560, %v657
    %v714 = vmax.f32 %v561, %v660
    %v715 = vmax.f32 %v562, %v665
    %v716 = vmax.f32 %v563, %v668
    %v717 = vmax.f32 %v564, %v673
    %v718 = vmax.f32 %v565, %v676
    %v719 = vmax.f32 %v566, %v681
    %v720 = vmax.f32 %v567, %v684
    %v721 = vmax.f32 %v568, %v689
    %v722 = vmax.f32 %v569, %v692
    %v723 = vmax.f32 %v570, %v697
    %v724 = vmax.f32 %v571, %v700
    %v725 = vmax.f32 %v572, %v705
    %v726 = vmax.f32 %v573, %v708
    %727 = vrot.lane.b32.xlu0 %v268, 32
    %v728 = vpop.permute.xlu0 %727
    %729 = vrot.lane.b32.xlu0 %v269, 32
    %v730 = vpop.permute.xlu0 %729
    %731 = vrot.lane.b32.xlu0 %v270, 32
    %v732 = vpop.permute.xlu0 %731
    %733 = vrot.lane.b32.xlu0 %v271, 32
    %v734 = vpop.permute.xlu0 %733
    %735 = vrot.lane.b32.xlu0 %v272, 32
    %v736 = vpop.permute.xlu0 %735
    %737 = vrot.lane.b32.xlu0 %v273, 32
    %v738 = vpop.permute.xlu0 %737
    %739 = vrot.lane.b32.xlu0 %v274, 32
    %v740 = vpop.permute.xlu0 %739
    %741 = vrot.lane.b32.xlu0 %v275, 32
    %v742 = vpop.permute.xlu0 %741
    %v744 = vsel %vm130, %v728, 0
    %v747 = vsel %vm130, %v730, 0
    %v750 = vsel %vm130, %v732, 0
    %v753 = vsel %vm130, %v734, 0
    %v756 = vsel %vm130, %v736, 0
    %v759 = vsel %vm130, %v738, 0
    %v762 = vsel %vm130, %v740, 0
    %v765 = vsel %vm130, %v742, 0
    %767 = vmatprep.subr.bf16.mxu0 0
    %768 = vmatpush1.bf16.msra.mxu0 0
    %769 = vmatprep.subr.bf16.mxu0 0
    %770 = vmatpush1.bf16.msra.mxu0 0
    %771 = vmatprep.subr.bf16.mxu0 0
    %772 = vmatpush1.bf16.msra.mxu0 0
    %773 = vmatprep.subr.bf16.mxu0 0
    %774 = vmatpush1.bf16.msra.mxu0 0
    %775 = vmatprep.subr.bf16.mxu0 0
    %776 = vmatpush1.bf16.msra.mxu0 0
    %777 = vmatprep.subr.bf16.mxu0 0
    %778 = vmatpush1.bf16.msra.mxu0 0
    %779 = vmatprep.subr.bf16.mxu0 0
    %780 = vmatpush1.bf16.msra.mxu0 %v127
    %781 = vmatprep.subr.bf16.mxu0 0
    %782 = vmatpush1.bf16.msra.mxu0 %v126
    %783 = vmatprep.subr.bf16.mxu0 0
    %784 = vmatpush2.bf16.msra.mxu0 0
    %785 = vmatprep.subr.bf16.mxu0 0
    %786 = vmatpush2.bf16.msra.mxu0 0
    %787 = vmatprep.subr.bf16.mxu0 0
    %788 = vmatpush2.bf16.msra.mxu0 0
    %789 = vmatprep.subr.bf16.mxu0 0
    %790 = vmatpush2.bf16.msra.mxu0 0
    %791 = vmatprep.subr.bf16.mxu0 0
    %792 = vmatpush2.bf16.msra.mxu0 0
    %793 = vmatprep.subr.bf16.mxu0 0
    %794 = vmatpush2.bf16.msra.mxu0 0
    %795 = vmatprep.subr.bf16.mxu0 0
    %796 = vmatpush2.bf16.msra.mxu0 0
    %797 = vmatprep.subr.bf16.mxu0 0
    %798 = vmatpush2.bf16.msra.mxu0 0
    %799 = vmatprep.mubr.bf16.mxu0 0
    %800 = vmatmul.mubr.bf16.gmra.mxu0 %v744
    %v801 = vpop.f32.mrf.mxu0
    %v802 = vadd.f32 0.0, %v801
    %v803 = vpop.f32.mrf.mxu0
    %v804 = vpop.f32.mrf.mxu0
    %v805 = vadd.f32 0.0, %v804
    %v806 = vpop.f32.mrf.mxu0
    %807 = vmatprep.mubr.bf16.mxu0 0
    %808 = vmatmul.mubr.bf16.gmra.mxu0 %v747
    %v809 = vpop.f32.mrf.mxu0
    %v810 = vadd.f32 0.0, %v809
    %v811 = vpop.f32.mrf.mxu0
    %v812 = vpop.f32.mrf.mxu0
    %v813 = vadd.f32 0.0, %v812
    %v814 = vpop.f32.mrf.mxu0
    %815 = vmatprep.mubr.bf16.mxu0 0
    %816 = vmatmul.mubr.bf16.gmra.mxu0 %v750
    %v817 = vpop.f32.mrf.mxu0
    %v818 = vadd.f32 0.0, %v817
    %v819 = vpop.f32.mrf.mxu0
    %v820 = vpop.f32.mrf.mxu0
    %v821 = vadd.f32 0.0, %v820
    %v822 = vpop.f32.mrf.mxu0
    %823 = vmatprep.mubr.bf16.mxu0 0
    %824 = vmatmul.mubr.bf16.gmra.mxu0 %v753
    %v825 = vpop.f32.mrf.mxu0
    %v826 = vadd.f32 0.0, %v825
    %v827 = vpop.f32.mrf.mxu0
    %v828 = vpop.f32.mrf.mxu0
    %v829 = vadd.f32 0.0, %v828
    %v830 = vpop.f32.mrf.mxu0
    %831 = vmatprep.mubr.bf16.mxu0 0
    %832 = vmatmul.mubr.bf16.gmra.mxu0 %v756
    %v833 = vpop.f32.mrf.mxu0
    %v834 = vadd.f32 0.0, %v833
    %v835 = vpop.f32.mrf.mxu0
    %v836 = vpop.f32.mrf.mxu0
    %v837 = vadd.f32 0.0, %v836
    %v838 = vpop.f32.mrf.mxu0
    %839 = vmatprep.mubr.bf16.mxu0 0
    %840 = vmatmul.mubr.bf16.gmra.mxu0 %v759
    %v841 = vpop.f32.mrf.mxu0
    %v842 = vadd.f32 0.0, %v841
    %v843 = vpop.f32.mrf.mxu0
    %v844 = vpop.f32.mrf.mxu0
    %v845 = vadd.f32 0.0, %v844
    %v846 = vpop.f32.mrf.mxu0
    %847 = vmatprep.mubr.bf16.mxu0 0
    %848 = vmatmul.mubr.bf16.gmra.mxu0 %v762
    %v849 = vpop.f32.mrf.mxu0
    %v850 = vadd.f32 0.0, %v849
    %v851 = vpop.f32.mrf.mxu0
    %v852 = vpop.f32.mrf.mxu0
    %v853 = vadd.f32 0.0, %v852
    %v854 = vpop.f32.mrf.mxu0
    %855 = vmatprep.mubr.bf16.mxu0 0
    %856 = vmatmul.mubr.bf16.gmra.mxu0 %v765
    %v857 = vpop.f32.mrf.mxu0
    %v858 = vadd.f32 0.0, %v857
    %v859 = vpop.f32.mrf.mxu0
    %v860 = vpop.f32.mrf.mxu0
    %v861 = vadd.f32 0.0, %v860
    %v862 = vpop.f32.mrf.mxu0
    %863 = vdwg.mxu0
    %v864 = vmax.f32 %v711, %v802
    %v865 = vmax.f32 %v712, %v805
    %v866 = vmax.f32 %v713, %v810
    %v867 = vmax.f32 %v714, %v813
    %v868 = vmax.f32 %v715, %v818
    %v869 = vmax.f32 %v716, %v821
    %v870 = vmax.f32 %v717, %v826
    %v871 = vmax.f32 %v718, %v829
    %v872 = vmax.f32 %v719, %v834
    %v873 = vmax.f32 %v720, %v837
    %v874 = vmax.f32 %v721, %v842
    %v875 = vmax.f32 %v722, %v845
    %v876 = vmax.f32 %v723, %v850
    %v877 = vmax.f32 %v724, %v853
    %v878 = vmax.f32 %v725, %v858
    %v879 = vmax.f32 %v726, %v861
    %v880 = vpack.c.bf16 %v865, %v864
    %v881 = vpack.c.bf16 %v867, %v866
    %v882 = vpack.c.bf16 %v869, %v868
    %v883 = vpack.c.bf16 %v871, %v870
    %v884 = vpack.c.bf16 %v873, %v872
    %v885 = vpack.c.bf16 %v875, %v874
    %v886 = vpack.c.bf16 %v877, %v876
    %v887 = vpack.c.bf16 %v879, %v878
    %v904 = vunpack.c.l.b16 %v94
    %v905 = vunpack.c.l.b16 %v95
    %v906 = vunpack.c.l.b16 %v96
    %v907 = vunpack.c.l.b16 %v97
    %v908 = vunpack.c.l.b16 %v98
    %v909 = vunpack.c.l.b16 %v99
    %v910 = vunpack.c.l.b16 %v100
    %v911 = vunpack.c.l.b16 %v101
    %v912 = vunpack.c.l.b16 %v102
    %v913 = vunpack.c.l.b16 %v103
    %v914 = vunpack.c.l.b16 %v104
    %v915 = vunpack.c.l.b16 %v105
    %v916 = vunpack.c.l.b16 %v106
    %v917 = vunpack.c.l.b16 %v107
    %v918 = vunpack.c.l.b16 %v108
    %v919 = vunpack.c.l.b16 %v109
    %v920 = vpack.c.b16 %v905, %v904
    %v921 = vpack.c.b16 %v907, %v906
    %v922 = vpack.c.b16 %v909, %v908
    %v923 = vpack.c.b16 %v911, %v910
    %v924 = vpack.c.b16 %v913, %v912
    %v925 = vpack.c.b16 %v915, %v914
    %v926 = vpack.c.b16 %v917, %v916
    %v927 = vpack.c.b16 %v919, %v918
    %936 = vmatprep.subr.bf16.mxu0 0
    %937 = vmatpush1.bf16.msra.mxu0 %v927
    %938 = vmatprep.subr.bf16.mxu0 0
    %939 = vmatpush1.bf16.msra.mxu0 %v926
    %940 = vmatprep.subr.bf16.mxu0 0
    %941 = vmatpush1.bf16.msra.mxu0 %v925
    %942 = vmatprep.subr.bf16.mxu0 0
    %943 = vmatpush1.bf16.msra.mxu0 %v924
    %944 = vmatprep.subr.bf16.mxu0 0
    %945 = vmatpush1.bf16.msra.mxu0 %v923
    %946 = vmatprep.subr.bf16.mxu0 0
    %947 = vmatpush1.bf16.msra.mxu0 %v922
    %948 = vmatprep.subr.bf16.mxu0 0
    %949 = vmatpush1.bf16.msra.mxu0 %v921
    %950 = vmatprep.subr.bf16.mxu0 0
    %951 = vmatpush1.bf16.msra.mxu0 %v920
    %952 = vmatprep.subr.bf16.mxu0 0
    %953 = vmatpush2.bf16.msra.mxu0 0
    %954 = vmatprep.subr.bf16.mxu0 0
    %955 = vmatpush2.bf16.msra.mxu0 0
    %956 = vmatprep.subr.bf16.mxu0 0
    %957 = vmatpush2.bf16.msra.mxu0 0
    %958 = vmatprep.subr.bf16.mxu0 0
    %959 = vmatpush2.bf16.msra.mxu0 0
    %960 = vmatprep.subr.bf16.mxu0 0
    %961 = vmatpush2.bf16.msra.mxu0 0
    %962 = vmatprep.subr.bf16.mxu0 0
    %963 = vmatpush2.bf16.msra.mxu0 0
    %964 = vmatprep.subr.bf16.mxu0 0
    %965 = vmatpush2.bf16.msra.mxu0 0
    %966 = vmatprep.subr.bf16.mxu0 0
    %967 = vmatpush2.bf16.msra.mxu0 0
    %968 = vmatprep.mubr.bf16.mxu0 0
    %969 = vmatmul.mubr.bf16.gmra.mxu0 %v880
    %v970 = vpop.f32.mrf.mxu0
    %v971 = vadd.f32 0.0, %v970
    %v972 = vpop.f32.mrf.mxu0
    %v973 = vpop.f32.mrf.mxu0
    %v974 = vadd.f32 0.0, %v973
    %v975 = vpop.f32.mrf.mxu0
    %976 = vmatprep.mubr.bf16.mxu0 0
    %977 = vmatmul.mubr.bf16.gmra.mxu0 %v881
    %v978 = vpop.f32.mrf.mxu0
    %v979 = vadd.f32 0.0, %v978
    %v980 = vpop.f32.mrf.mxu0
    %v981 = vpop.f32.mrf.mxu0
    %v982 = vadd.f32 0.0, %v981
    %v983 = vpop.f32.mrf.mxu0
    %984 = vmatprep.mubr.bf16.mxu0 0
    %985 = vmatmul.mubr.bf16.gmra.mxu0 %v882
    %v986 = vpop.f32.mrf.mxu0
    %v987 = vadd.f32 0.0, %v986
    %v988 = vpop.f32.mrf.mxu0
    %v989 = vpop.f32.mrf.mxu0
    %v990 = vadd.f32 0.0, %v989
    %v991 = vpop.f32.mrf.mxu0
    %992 = vmatprep.mubr.bf16.mxu0 0
    %993 = vmatmul.mubr.bf16.gmra.mxu0 %v883
    %v994 = vpop.f32.mrf.mxu0
    %v995 = vadd.f32 0.0, %v994
    %v996 = vpop.f32.mrf.mxu0
    %v997 = vpop.f32.mrf.mxu0
    %v998 = vadd.f32 0.0, %v997
    %v999 = vpop.f32.mrf.mxu0
    %1000 = vmatprep.mubr.bf16.mxu0 0
    %1001 = vmatmul.mubr.bf16.gmra.mxu0 %v884
    %v1002 = vpop.f32.mrf.mxu0
    %v1003 = vadd.f32 0.0, %v1002
    %v1004 = vpop.f32.mrf.mxu0
    %v1005 = vpop.f32.mrf.mxu0
    %v1006 = vadd.f32 0.0, %v1005
    %v1007 = vpop.f32.mrf.mxu0
    %1008 = vmatprep.mubr.bf16.mxu0 0
    %1009 = vmatmul.mubr.bf16.gmra.mxu0 %v885
    %v1010 = vpop.f32.mrf.mxu0
    %v1011 = vadd.f32 0.0, %v1010
    %v1012 = vpop.f32.mrf.mxu0
    %v1013 = vpop.f32.mrf.mxu0
    %v1014 = vadd.f32 0.0, %v1013
    %v1015 = vpop.f32.mrf.mxu0
    %1016 = vmatprep.mubr.bf16.mxu0 0
    %1017 = vmatmul.mubr.bf16.gmra.mxu0 %v886
    %v1018 = vpop.f32.mrf.mxu0
    %v1019 = vadd.f32 0.0, %v1018
    %v1020 = vpop.f32.mrf.mxu0
    %v1021 = vpop.f32.mrf.mxu0
    %v1022 = vadd.f32 0.0, %v1021
    %v1023 = vpop.f32.mrf.mxu0
    %1024 = vmatprep.mubr.bf16.mxu0 0
    %1025 = vmatmul.mubr.bf16.gmra.mxu0 %v887
    %v1026 = vpop.f32.mrf.mxu0
    %v1027 = vadd.f32 0.0, %v1026
    %v1028 = vpop.f32.mrf.mxu0
    %v1029 = vpop.f32.mrf.mxu0
    %v1030 = vadd.f32 0.0, %v1029
    %v1031 = vpop.f32.mrf.mxu0
    %1032 = vdwg.mxu0
    %v1033 = vmul.f32 %v971, %v971
    %v1034 = vmul.f32 %v974, %v974
    %v1035 = vmul.f32 %v979, %v979
    %v1036 = vmul.f32 %v982, %v982
    %v1037 = vmul.f32 %v987, %v987
    %v1038 = vmul.f32 %v990, %v990
    %v1039 = vmul.f32 %v995, %v995
    %v1040 = vmul.f32 %v998, %v998
    %v1041 = vmul.f32 %v1003, %v1003
    %v1042 = vmul.f32 %v1006, %v1006
    %v1043 = vmul.f32 %v1011, %v1011
    %v1044 = vmul.f32 %v1014, %v1014
    %v1045 = vmul.f32 %v1019, %v1019
    %v1046 = vmul.f32 %v1022, %v1022
    %v1047 = vmul.f32 %v1027, %v1027
    %v1048 = vmul.f32 %v1030, %v1030
    %1049 = vadd.xlane.f32.xlu0 %v1033
    %v1050 = vpop.xlane.xlu0 %1049
    %1051 = vadd.xlane.f32.xlu0 %v1034
    %v1052 = vpop.xlane.xlu0 %1051
    %1053 = vadd.xlane.f32.xlu0 %v1035
    %v1054 = vpop.xlane.xlu0 %1053
    %1055 = vadd.xlane.f32.xlu0 %v1036
    %v1056 = vpop.xlane.xlu0 %1055
    %1057 = vadd.xlane.f32.xlu0 %v1037
    %v1058 = vpop.xlane.xlu0 %1057
    %1059 = vadd.xlane.f32.xlu0 %v1038
    %v1060 = vpop.xlane.xlu0 %1059
    %1061 = vadd.xlane.f32.xlu0 %v1039
    %v1062 = vpop.xlane.xlu0 %1061
    %1063 = vadd.xlane.f32.xlu0 %v1040
    %v1064 = vpop.xlane.xlu0 %1063
    %1065 = vadd.xlane.f32.xlu0 %v1041
    %v1066 = vpop.xlane.xlu0 %1065
    %1067 = vadd.xlane.f32.xlu0 %v1042
    %v1068 = vpop.xlane.xlu0 %1067
    %1069 = vadd.xlane.f32.xlu0 %v1043
    %v1070 = vpop.xlane.xlu0 %1069
    %1071 = vadd.xlane.f32.xlu0 %v1044
    %v1072 = vpop.xlane.xlu0 %1071
    %1073 = vadd.xlane.f32.xlu0 %v1045
    %v1074 = vpop.xlane.xlu0 %1073
    %1075 = vadd.xlane.f32.xlu0 %v1046
    %v1076 = vpop.xlane.xlu0 %1075
    %1077 = vadd.xlane.f32.xlu0 %v1047
    %v1078 = vpop.xlane.xlu0 %1077
    %1079 = vadd.xlane.f32.xlu0 %v1048
    %v1080 = vpop.xlane.xlu0 %1079
    %v1081 = vmax.f32 %v1050, 1e-24
    %v1082 = vmax.f32 %v1052, 1e-24
    %v1083 = vmax.f32 %v1054, 1e-24
    %v1084 = vmax.f32 %v1056, 1e-24
    %v1085 = vmax.f32 %v1058, 1e-24
    %v1086 = vmax.f32 %v1060, 1e-24
    %v1087 = vmax.f32 %v1062, 1e-24
    %v1088 = vmax.f32 %v1064, 1e-24
    %v1089 = vmax.f32 %v1066, 1e-24
    %v1090 = vmax.f32 %v1068, 1e-24
    %v1091 = vmax.f32 %v1070, 1e-24
    %v1092 = vmax.f32 %v1072, 1e-24
    %v1093 = vmax.f32 %v1074, 1e-24
    %v1094 = vmax.f32 %v1076, 1e-24
    %v1095 = vmax.f32 %v1078, 1e-24
    %v1096 = vmax.f32 %v1080, 1e-24
    %v1097 = vrsqrt.pop %v1081
    %v1098 = vrsqrt.pop %v1082
    %v1099 = vrsqrt.pop %v1083
    %v1100 = vrsqrt.pop %v1084
    %v1101 = vrsqrt.pop %v1085
    %v1102 = vrsqrt.pop %v1086
    %v1103 = vrsqrt.pop %v1087
    %v1104 = vrsqrt.pop %v1088
    %v1105 = vrsqrt.pop %v1089
    %v1106 = vrsqrt.pop %v1090
    %v1107 = vrsqrt.pop %v1091
    %v1108 = vrsqrt.pop %v1092
    %v1109 = vrsqrt.pop %v1093
    %v1110 = vrsqrt.pop %v1094
    %v1111 = vrsqrt.pop %v1095
    %v1112 = vrsqrt.pop %v1096
    %v1113 = vmul.f32 %v971, %v1097
    %v1114 = vmul.f32 %v974, %v1098
    %v1115 = vmul.f32 %v979, %v1099
    %v1116 = vmul.f32 %v982, %v1100
    %v1117 = vmul.f32 %v987, %v1101
    %v1118 = vmul.f32 %v990, %v1102
    %v1119 = vmul.f32 %v995, %v1103
    %v1120 = vmul.f32 %v998, %v1104
    %v1121 = vmul.f32 %v1003, %v1105
    %v1122 = vmul.f32 %v1006, %v1106
    %v1123 = vmul.f32 %v1011, %v1107
    %v1124 = vmul.f32 %v1014, %v1108
    %v1125 = vmul.f32 %v1019, %v1109
    %v1126 = vmul.f32 %v1022, %v1110
    %v1127 = vmul.f32 %v1027, %v1111
    %v1128 = vmul.f32 %v1030, %v1112
    %v1129 = vadd.f32 %v74, %v1113
    %v1130 = vadd.f32 %v75, %v1114
    %v1131 = vadd.f32 %v76, %v1115
    %v1132 = vadd.f32 %v77, %v1116
    %v1133 = vadd.f32 %v78, %v1117
    %v1134 = vadd.f32 %v79, %v1118
    %v1135 = vadd.f32 %v80, %v1119
    %v1136 = vadd.f32 %v81, %v1120
    %v1137 = vadd.f32 %v82, %v1121
    %v1138 = vadd.f32 %v83, %v1122
    %v1139 = vadd.f32 %v84, %v1123
    %v1140 = vadd.f32 %v85, %v1124
    %v1141 = vadd.f32 %v86, %v1125
    %v1142 = vadd.f32 %v87, %v1126
    %v1143 = vadd.f32 %v88, %v1127
    %v1144 = vadd.f32 %v89, %v1128
    %v1145 = vmul.f32 %v1129, %v1129
    %v1146 = vmul.f32 %v1130, %v1130
    %v1147 = vmul.f32 %v1131, %v1131
    %v1148 = vmul.f32 %v1132, %v1132
    %v1149 = vmul.f32 %v1133, %v1133
    %v1150 = vmul.f32 %v1134, %v1134
    %v1151 = vmul.f32 %v1135, %v1135
    %v1152 = vmul.f32 %v1136, %v1136
    %v1153 = vmul.f32 %v1137, %v1137
    %v1154 = vmul.f32 %v1138, %v1138
    %v1155 = vmul.f32 %v1139, %v1139
    %v1156 = vmul.f32 %v1140, %v1140
    %v1157 = vmul.f32 %v1141, %v1141
    %v1158 = vmul.f32 %v1142, %v1142
    %v1159 = vmul.f32 %v1143, %v1143
    %v1160 = vmul.f32 %v1144, %v1144
    %1161 = vadd.xlane.f32.xlu0 %v1145
    %v1162 = vpop.xlane.xlu0 %1161
    %1163 = vadd.xlane.f32.xlu0 %v1146
    %v1164 = vpop.xlane.xlu0 %1163
    %1165 = vadd.xlane.f32.xlu0 %v1147
    %v1166 = vpop.xlane.xlu0 %1165
    %1167 = vadd.xlane.f32.xlu0 %v1148
    %v1168 = vpop.xlane.xlu0 %1167
    %1169 = vadd.xlane.f32.xlu0 %v1149
    %v1170 = vpop.xlane.xlu0 %1169
    %1171 = vadd.xlane.f32.xlu0 %v1150
    %v1172 = vpop.xlane.xlu0 %1171
    %1173 = vadd.xlane.f32.xlu0 %v1151
    %v1174 = vpop.xlane.xlu0 %1173
    %1175 = vadd.xlane.f32.xlu0 %v1152
    %v1176 = vpop.xlane.xlu0 %1175
    %1177 = vadd.xlane.f32.xlu0 %v1153
    %v1178 = vpop.xlane.xlu0 %1177
    %1179 = vadd.xlane.f32.xlu0 %v1154
    %v1180 = vpop.xlane.xlu0 %1179
    %1181 = vadd.xlane.f32.xlu0 %v1155
    %v1182 = vpop.xlane.xlu0 %1181
    %1183 = vadd.xlane.f32.xlu0 %v1156
    %v1184 = vpop.xlane.xlu0 %1183
    %1185 = vadd.xlane.f32.xlu0 %v1157
    %v1186 = vpop.xlane.xlu0 %1185
    %1187 = vadd.xlane.f32.xlu0 %v1158
    %v1188 = vpop.xlane.xlu0 %1187
    %1189 = vadd.xlane.f32.xlu0 %v1159
    %v1190 = vpop.xlane.xlu0 %1189
    %1191 = vadd.xlane.f32.xlu0 %v1160
    %v1192 = vpop.xlane.xlu0 %1191
    %v1193 = vmax.f32 %v1162, 1e-24
    %v1194 = vmax.f32 %v1164, 1e-24
    %v1195 = vmax.f32 %v1166, 1e-24
    %v1196 = vmax.f32 %v1168, 1e-24
    %v1197 = vmax.f32 %v1170, 1e-24
    %v1198 = vmax.f32 %v1172, 1e-24
    %v1199 = vmax.f32 %v1174, 1e-24
    %v1200 = vmax.f32 %v1176, 1e-24
    %v1201 = vmax.f32 %v1178, 1e-24
    %v1202 = vmax.f32 %v1180, 1e-24
    %v1203 = vmax.f32 %v1182, 1e-24
    %v1204 = vmax.f32 %v1184, 1e-24
    %v1205 = vmax.f32 %v1186, 1e-24
    %v1206 = vmax.f32 %v1188, 1e-24
    %v1207 = vmax.f32 %v1190, 1e-24
    %v1208 = vmax.f32 %v1192, 1e-24
    %v1209 = vrsqrt.pop %v1193
    %v1210 = vrsqrt.pop %v1194
    %v1211 = vrsqrt.pop %v1195
    %v1212 = vrsqrt.pop %v1196
    %v1213 = vrsqrt.pop %v1197
    %v1214 = vrsqrt.pop %v1198
    %v1215 = vrsqrt.pop %v1199
    %v1216 = vrsqrt.pop %v1200
    %v1217 = vrsqrt.pop %v1201
    %v1218 = vrsqrt.pop %v1202
    %v1219 = vrsqrt.pop %v1203
    %v1220 = vrsqrt.pop %v1204
    %v1221 = vrsqrt.pop %v1205
    %v1222 = vrsqrt.pop %v1206
    %v1223 = vrsqrt.pop %v1207
    %v1224 = vrsqrt.pop %v1208
    %v1225 = vmul.f32 %v1129, %v1209
    %v1226 = vmul.f32 %v1130, %v1210
    %v1227 = vmul.f32 %v1131, %v1211
    %v1228 = vmul.f32 %v1132, %v1212
    %v1229 = vmul.f32 %v1133, %v1213
    %v1230 = vmul.f32 %v1134, %v1214
    %v1231 = vmul.f32 %v1135, %v1215
    %v1232 = vmul.f32 %v1136, %v1216
    %v1233 = vmul.f32 %v1137, %v1217
    %v1234 = vmul.f32 %v1138, %v1218
    %v1235 = vmul.f32 %v1139, %v1219
    %v1236 = vmul.f32 %v1140, %v1220
    %v1237 = vmul.f32 %v1141, %v1221
    %v1238 = vmul.f32 %v1142, %v1222
    %v1239 = vmul.f32 %v1143, %v1223
    %v1240 = vmul.f32 %v1144, %v1224
    %1241 = vst [vmem:[#allocation10] sm:$0xff] %v1225
    %1242 = vst [vmem:[#allocation10 + $0x8] sm:$0xff] %v1226
    %1243 = vst [vmem:[#allocation10 + $0x10] sm:$0xff] %v1227
    %1244 = vst [vmem:[#allocation10 + $0x18] sm:$0xff] %v1228
    %1245 = vst [vmem:[#allocation10 + $0x20] sm:$0xff] %v1229
    %1246 = vst [vmem:[#allocation10 + $0x28] sm:$0xff] %v1230
    %1247 = vst [vmem:[#allocation10 + $0x30] sm:$0xff] %v1231
    %1248 = vst [vmem:[#allocation10 + $0x38] sm:$0xff] %v1232
    %1249 = vst [vmem:[#allocation10 + $0x40] sm:$0xff] %v1233
    %1250 = vst [vmem:[#allocation10 + $0x48] sm:$0xff] %v1234
    %1251 = vst [vmem:[#allocation10 + $0x50] sm:$0xff] %v1235
    %1252 = vst [vmem:[#allocation10 + $0x58] sm:$0xff] %v1236
    %1253 = vst [vmem:[#allocation10 + $0x60] sm:$0xff] %v1237
    %1254 = vst [vmem:[#allocation10 + $0x68] sm:$0xff] %v1238
    %1255 = vst [vmem:[#allocation10 + $0x70] sm:$0xff] %v1239
    %1256 = vst [vmem:[#allocation10 + $0x78] sm:$0xff] %v1240
    // Predicated region
    $region34: #{tpu_custom_call.1} parent=1 // pred_check
      _
    $region35: #{tpu_custom_call.1} parent=1 // pred_check_branch
      %1258 = sbr.rel (0) target = $region37
    $region36: #{tpu_custom_call.1} parent=1 // pred_region
      %s1260 = ssub.s32 2048, 2048
      %1261 = vsyncadd [#allocation4], %s1260
      %s1262 = sshll.u32 [#allocation10], 4
      %s1263 = int_to_ptr.vmem [resolvable:$true] %s1262
      %1268 = dma.vmem_to_hbm [thread:$0]  %s1263, 2048, %s4, [#allocation4], 128, 128, 8
    $region37: #{tpu_custom_call.1} parent=1 // pred_fallthru
      _
    // Predicated region
    $region38: #{tpu_custom_call.1} parent=1 // pred_check
      _
    $region39: #{tpu_custom_call.1} parent=1 // pred_check_branch
      %1270 = sbr.rel (0) target = $region41
    $region40: #{tpu_custom_call.1} parent=1 // pred_region
      %1271 = dma.done [#allocation4], 2048
    $region41: #{tpu_custom_call.1} parent=1 // pred_fallthru
      _
    %1272 = vsyncpa [#allocation3], 1
    %1273 = vsyncpa [#allocation6], 1
    %1274 = vsyncpa [#allocation9], 1
    %1275 = vsyncpa [#allocation4], 1

</llo_original>
